<compile_context>
chip_gen: v7x
topology: tpu7x:2x2x1
jax: 0.10.0
libtpu: 0.0.40
codegen_flags: <defaults>
</compile_context>

<pallas_src>
import functools

import jax
import jax.numpy as jnp
from jax import lax
from jax.experimental import pallas as pl
from jax.experimental.pallas import tpu as pltpu


def _cross_attn_kernel(q_ref, k_ref, v_ref,
                       wq_ref, wk_ref, wv_ref, wo_ref, bo_ref,
                       out_ref, acc_ref, *kv_cache,
                       num_heads: int, cache_kv: bool):
    """Grid = (batch, q_tile, head); head is the innermost (reduction) axis.

    q_ref  : (1, tq, D)    current batch / q-tile block
    k_ref  : (1, Nk, D)    full keys for this batch (resident across qi, h)
    v_ref  : (1, Nv, D)
    wq_ref : (1, D, hd)    per-head W_q^T with the attention scale folded in
    wk_ref : (1, D, hd)    per-head W_k^T
    wv_ref : (1, D, hd)    per-head W_v^T
    wo_ref : (1, hd, D)    per-head slice of W_o^T
    bo_ref : (1, D)        output-projection bias
    out_ref: (1, tq, D)    written once, on the last head
    acc_ref: (tq, D) f32   VMEM accumulator over heads
    kv_cache (optional): (H, Nk, hd) / (H, Nv, hd) per-head K/V projection cache
    """
    qi = pl.program_id(1)
    h = pl.program_id(2)

    q = q_ref[0]                      # (tq, D)
    dt = q.dtype                      # MXU operand dtype (bf16 in -> bf16 MXU)

    if cache_kv:
        kh_ref, vh_ref = kv_cache

        # Per-head K/V projections depend only on (batch, head): compute them
        # on the first q tile and reuse from VMEM for all later q tiles.
        @pl.when(qi == 0)
        def _project_kv():
            kh_ref[h] = jnp.dot(k_ref[0], wk_ref[0],
                                preferred_element_type=jnp.float32).astype(dt)
            vh_ref[h] = jnp.dot(v_ref[0], wv_ref[0],
                                preferred_element_type=jnp.float32).astype(dt)

        kh = kh_ref[h]                # (Nk, hd)
        vh = vh_ref[h]                # (Nv, hd)
    else:
        kh = jnp.dot(k_ref[0], wk_ref[0],
                     preferred_element_type=jnp.float32).astype(dt)
        vh = jnp.dot(v_ref[0], wv_ref[0],
                     preferred_element_type=jnp.float32).astype(dt)

    # Per-head Q projection: (tq, D) @ (D, hd). `scale` already folded into wq.
    qh = jnp.dot(q, wq_ref[0], preferred_element_type=jnp.float32).astype(dt)

    # Scores for this head / q-tile: (tq, Nk).
    s = lax.dot_general(qh, kh, (((1,), (1,)), ((), ())),
                        preferred_element_type=jnp.float32)

    # Numerically-stable softmax with deferred normalization: one reciprocal on
    # the (tq, 1) row sums, then scale the small (tq, hd) context.
    m = jnp.max(s, axis=-1, keepdims=True)
    e = jnp.exp(s - m)
    l = jnp.sum(e, axis=-1, keepdims=True)
    ctx = jnp.dot(e.astype(dt), vh, preferred_element_type=jnp.float32)
    ctx = ctx * (1.0 / l)             # (tq, hd)

    # This head's contribution to the output projection: (tq, hd) @ (hd, D).
    contrib = jnp.dot(ctx.astype(dt), wo_ref[0],
                      preferred_element_type=jnp.float32)

    @pl.when(h == 0)
    def _init():
        acc_ref[...] = contrib        # write, no zero-fill pass

    @pl.when(h > 0)
    def _accum():
        acc_ref[...] += contrib

    @pl.when(h == num_heads - 1)
    def _finish():
        out_ref[0] = (acc_ref[...] + bo_ref[...]).astype(out_ref.dtype)


def prepare_cross_attention_params(params, *, num_heads: int):
    """One-time host-side weight prep (call once at parameter-load time).

    PyTorch nn.Linear stores W as (out, in); the kernel wants per-head
    x @ W^T operands, so heads are pre-split and pre-transposed here instead
    of paying a DxD transpose / relayout every call (or inside the kernel).
    The attention scale is folded into W_q (exact, since qkv_bias=False).
    """
    wq, wk, wv, wo, bo = (params['wq'], params['wk'], params['wv'],
                          params['wo'], params['bo'])
    dim = wq.shape[0]
    hd = dim // num_heads
    scale = hd ** (-0.5)

    def split_in_proj(w):             # (D, D) -> (H, D, hd)
        return w.reshape(num_heads, hd, dim).transpose(0, 2, 1)

    return {
        'wq_h': split_in_proj(wq * scale),
        'wk_h': split_in_proj(wk),
        'wv_h': split_in_proj(wv),
        'wo_h': wo.reshape(dim, num_heads, hd).transpose(1, 2, 0),  # (H, hd, D)
        'bo': bo.reshape(1, dim),
    }


def cross_attention_pallas(q, k, v, prepared, *, num_heads: int, block_q=None):
    """q: (B, Nq, D), k: (B, Nk, D), v: (B, Nv, D) -> (B, Nq, D)."""
    bs, nq, dim = q.shape
    _, nk, _ = k.shape
    _, nv, _ = v.shape
    hd = dim // num_heads

    # q tile: multiple of 8 (sublane); cap it so the (tq, Nk) f32 scores and
    # the (tq, D) accumulator stay comfortably inside VMEM.
    nq8 = ((nq + 7) // 8) * 8
    if block_q is None:
        if nq8 <= 512:
            block_q = nq8
        elif nk <= 2048:
            block_q = 256
        else:
            block_q = 128
    grid_q = pl.cdiv(nq, block_q)
    nq_pad = grid_q * block_q
    if nq_pad != nq:
        q = jnp.pad(q, ((0, 0), (0, nq_pad - nq), (0, 0)))

    # Cache per-head K/V projections across q tiles when there is more than
    # one q tile and the cache comfortably fits in VMEM.
    cache_bytes = 2 * nk * dim * q.dtype.itemsize
    cache_kv = (grid_q > 1) and (cache_bytes <= 16 * 1024 * 1024)

    scratch_shapes = [pltpu.VMEM((block_q, dim), jnp.float32)]
    if cache_kv:
        scratch_shapes += [pltpu.VMEM((num_heads, nk, hd), q.dtype),
                           pltpu.VMEM((num_heads, nv, hd), q.dtype)]

    # If the K/V cache is used, the q-tile axis must not be split across cores
    # (core 1 would never run the qi==0 cache-fill step); batch stays parallel.
    qi_sem = "arbitrary" if cache_kv else "parallel"

    out = pl.pallas_call(
        functools.partial(_cross_attn_kernel,
                          num_heads=num_heads, cache_kv=cache_kv),
        out_shape=jax.ShapeDtypeStruct((bs, nq_pad, dim), q.dtype),
        grid_spec=pltpu.PrefetchScalarGridSpec(
            num_scalar_prefetch=0,
            grid=(bs, grid_q, num_heads),
            in_specs=[
                pl.BlockSpec((1, block_q, dim), lambda b, i, h: (b, i, 0)),
                pl.BlockSpec((1, nk, dim), lambda b, i, h: (b, 0, 0)),
                pl.BlockSpec((1, nv, dim), lambda b, i, h: (b, 0, 0)),
                pl.BlockSpec((1, dim, hd), lambda b, i, h: (h, 0, 0)),
                pl.BlockSpec((1, dim, hd), lambda b, i, h: (h, 0, 0)),
                pl.BlockSpec((1, dim, hd), lambda b, i, h: (h, 0, 0)),
                pl.BlockSpec((1, hd, dim), lambda b, i, h: (h, 0, 0)),
                pl.BlockSpec((1, dim), lambda b, i, h: (0, 0)),
            ],
            out_specs=pl.BlockSpec((1, block_q, dim), lambda b, i, h: (b, i, 0)),
            scratch_shapes=scratch_shapes,
        ),
        compiler_params=pltpu.CompilerParams(
            dimension_semantics=("parallel", qi_sem, "arbitrary"),
            vmem_limit_bytes=64 * 1024 * 1024,
        ),
    )(q, k, v, prepared['wq_h'], prepared['wk_h'], prepared['wv_h'],
      prepared['wo_h'], prepared['bo'])

    return out[:, :nq, :] if nq_pad != nq else out


def cross_attention_ref(q, k, v, params, *, num_heads: int):
    """Pure-JAX reference mirroring the PyTorch forward."""
    bs, nq, dim = q.shape
    head_dim = dim // num_heads
    scale = head_dim ** (-0.5)

    def lin(x, w, b=None):
        y = x @ w.T
        return y if b is None else y + b

    qp = lin(q, params['wq'])
    kp = lin(k, params['wk'])
    vp = lin(v, params['wv'])

    def split(x):
        b, n, _ = x.shape
        return x.reshape(b, n, num_heads, head_dim).transpose(0, 2, 1, 3)

    qh, kh, vh = split(qp), split(kp), split(vp)
    attn = jax.nn.softmax((qh * scale) @ kh.transpose(0, 1, 3, 2), axis=-1)
    x = attn @ vh
    x = x.transpose(0, 2, 1, 3).reshape(bs, nq, dim)
    return lin(x, params['wo'], params['bo'])


if __name__ == "__main__":
    # Small shapes consistent with the module: dim divisible by num_heads.
    bs, nq, nk, nv = 2, 8, 8, 8
    dim, num_heads = 64, 8

    key = jax.random.PRNGKey(0)
    keys = jax.random.split(key, 9)
    q = jax.random.normal(keys[0], (bs, nq, dim), dtype=jnp.float32)
    k = jax.random.normal(keys[1], (bs, nk, dim), dtype=jnp.float32)
    v = jax.random.normal(keys[2], (bs, nv, dim), dtype=jnp.float32)

    s = 0.05
    params = {
        'wq': s * jax.random.normal(keys[3], (dim, dim), dtype=jnp.float32),
        'wk': s * jax.random.normal(keys[4], (dim, dim), dtype=jnp.float32),
        'wv': s * jax.random.normal(keys[5], (dim, dim), dtype=jnp.float32),
        'wo': s * jax.random.normal(keys[6], (dim, dim), dtype=jnp.float32),
        'bo': s * jax.random.normal(keys[7], (dim,), dtype=jnp.float32),
    }

    prepared = prepare_cross_attention_params(params, num_heads=num_heads)

    # Test 1: single q tile (common ViT case).
    out = cross_attention_pallas(q, k, v, prepared, num_heads=num_heads)
    out = jax.block_until_ready(out)
    ref = cross_attention_ref(q, k, v, params, num_heads=num_heads)
    assert out.shape == (bs, nq, dim)
    assert jnp.allclose(out, ref, atol=1e-4, rtol=1e-4), \
        f"max abs err {jnp.max(jnp.abs(out - ref))}"

    # Test 2: multi q-tile path (exercises q padding + per-head K/V cache).
    nq2 = 20
    q2 = jax.random.normal(keys[8], (bs, nq2, dim), dtype=jnp.float32)
    out2 = cross_attention_pallas(q2, k, v, prepared,
                                  num_heads=num_heads, block_q=8)
    out2 = jax.block_until_ready(out2)
    ref2 = cross_attention_ref(q2, k, v, params, num_heads=num_heads)
    assert out2.shape == (bs, nq2, dim)
    assert jnp.allclose(out2, ref2, atol=1e-4, rtol=1e-4), \
        f"max abs err {jnp.max(jnp.abs(out2 - ref2))}"

    print("KERNEL_OK")
</pallas_src>

<mosaic_0001>
module attributes {stable_mosaic.version = 11 : i64} {
  func.func @_cross_attn_kernel(%arg0: i32, %arg1: i32, %arg2: i32, %arg3: memref<1x8x64xf32, #tpu.memory_space<vmem>>, %arg4: memref<1x8x64xf32, #tpu.memory_space<vmem>>, %arg5: memref<1x8x64xf32, #tpu.memory_space<vmem>>, %arg6: memref<1x64x8xf32, #tpu.memory_space<vmem>>, %arg7: memref<1x64x8xf32, #tpu.memory_space<vmem>>, %arg8: memref<1x64x8xf32, #tpu.memory_space<vmem>>, %arg9: memref<1x8x64xf32, #tpu.memory_space<vmem>>, %arg10: memref<1x64xf32, #tpu.memory_space<vmem>>, %arg11: memref<1x8x64xf32, #tpu.memory_space<vmem>>, %arg12: memref<8x64xf32, #tpu.memory_space<vmem>>) attributes {dimension_semantics = [#tpu.dimension_semantics<parallel>, #tpu.dimension_semantics<parallel>, #tpu.dimension_semantics<arbitrary>], iteration_bounds = array<i64: 2, 1, 8>, scalar_prefetch = 0 : i64, scratch_operands = 1 : i64, tpu.core_type = #tpu.core_type<tc>, window_params = [{transform_indices = @transform_0, window_bounds = array<i64: 1, 8, 64>}, {transform_indices = @transform_1, window_bounds = array<i64: 1, 8, 64>}, {transform_indices = @transform_2, window_bounds = array<i64: 1, 8, 64>}, {transform_indices = @transform_3, window_bounds = array<i64: 1, 64, 8>}, {transform_indices = @transform_4, window_bounds = array<i64: 1, 64, 8>}, {transform_indices = @transform_5, window_bounds = array<i64: 1, 64, 8>}, {transform_indices = @transform_6, window_bounds = array<i64: 1, 8, 64>}, {pipeline_mode = #tpu.pipeline_mode<synchronous>, transform_indices = @transform_7, window_bounds = array<i64: 1, 64>}, {transform_indices = @transform_8, window_bounds = array<i64: 1, 8, 64>}]} {
    %c0 = arith.constant 0 : index
    %c0_0 = arith.constant 0 : index
    %c0_1 = arith.constant 0 : index
    %0 = vector.load %arg3[%c0, %c0_0, %c0_1] : memref<1x8x64xf32, #tpu.memory_space<vmem>>, vector<1x8x64xf32>
    %1 = vector.shape_cast %0 : vector<1x8x64xf32> to vector<8x64xf32>
    %c0_2 = arith.constant 0 : index
    %c0_3 = arith.constant 0 : index
    %c0_4 = arith.constant 0 : index
    %2 = vector.load %arg4[%c0_2, %c0_3, %c0_4] : memref<1x8x64xf32, #tpu.memory_space<vmem>>, vector<1x8x64xf32>
    %3 = vector.shape_cast %2 : vector<1x8x64xf32> to vector<8x64xf32>
    %c0_5 = arith.constant 0 : index
    %c0_6 = arith.constant 0 : index
    %c0_7 = arith.constant 0 : index
    %4 = vector.load %arg7[%c0_5, %c0_6, %c0_7] : memref<1x64x8xf32, #tpu.memory_space<vmem>>, vector<1x64x8xf32>
    %5 = vector.shape_cast %4 : vector<1x64x8xf32> to vector<64x8xf32>
    %cst = arith.constant dense<0.000000e+00> : vector<8x8xf32>
    %6 = tpu.matmul %3, %5, %cst {dimension_numbers = #tpu.dot_dimension_numbers<[1], [0], [0], [1], [0, 0, 1, 1], [], []>} : vector<8x64xf32>, vector<64x8xf32>, vector<8x8xf32> -> vector<8x8xf32>
    %c0_8 = arith.constant 0 : index
    %c0_9 = arith.constant 0 : index
    %c0_10 = arith.constant 0 : index
    %7 = vector.load %arg5[%c0_8, %c0_9, %c0_10] : memref<1x8x64xf32, #tpu.memory_space<vmem>>, vector<1x8x64xf32>
    %8 = vector.shape_cast %7 : vector<1x8x64xf32> to vector<8x64xf32>
    %c0_11 = arith.constant 0 : index
    %c0_12 = arith.constant 0 : index
    %c0_13 = arith.constant 0 : index
    %9 = vector.load %arg8[%c0_11, %c0_12, %c0_13] : memref<1x64x8xf32, #tpu.memory_space<vmem>>, vector<1x64x8xf32>
    %10 = vector.shape_cast %9 : vector<1x64x8xf32> to vector<64x8xf32>
    %cst_14 = arith.constant dense<0.000000e+00> : vector<8x8xf32>
    %11 = tpu.matmul %8, %10, %cst_14 {dimension_numbers = #tpu.dot_dimension_numbers<[1], [0], [0], [1], [0, 0, 1, 1], [], []>} : vector<8x64xf32>, vector<64x8xf32>, vector<8x8xf32> -> vector<8x8xf32>
    %c0_15 = arith.constant 0 : index
    %c0_16 = arith.constant 0 : index
    %c0_17 = arith.constant 0 : index
    %12 = vector.load %arg6[%c0_15, %c0_16, %c0_17] : memref<1x64x8xf32, #tpu.memory_space<vmem>>, vector<1x64x8xf32>
    %13 = vector.shape_cast %12 : vector<1x64x8xf32> to vector<64x8xf32>
    %cst_18 = arith.constant dense<0.000000e+00> : vector<8x8xf32>
    %14 = tpu.matmul %1, %13, %cst_18 {dimension_numbers = #tpu.dot_dimension_numbers<[1], [0], [0], [1], [0, 0, 1, 1], [], []>} : vector<8x64xf32>, vector<64x8xf32>, vector<8x8xf32> -> vector<8x8xf32>
    %cst_19 = arith.constant dense<0.000000e+00> : vector<8x8xf32>
    %15 = tpu.matmul %14, %6, %cst_19 {dimension_numbers = #tpu.dot_dimension_numbers<[1], [1], [0], [0], [0, 0, 1, 0], [], []>} : vector<8x8xf32>, vector<8x8xf32>, vector<8x8xf32> -> vector<8x8xf32>
    %cst_20 = arith.constant dense<0xFF800000> : vector<8xf32>
    %16 = vector.multi_reduction <maximumf>, %15, %cst_20 [1] : vector<8x8xf32> to vector<8xf32>
    %17 = vector.shape_cast %16 : vector<8xf32> to vector<8x1xf32>
    %18 = vector.broadcast %17 : vector<8x1xf32> to vector<8x8xf32>
    %19 = arith.subf %15, %18 : vector<8x8xf32>
    %20 = math.exp %19 : vector<8x8xf32>
    %cst_21 = arith.constant dense<0.000000e+00> : vector<8xf32>
    %21 = vector.multi_reduction <add>, %20, %cst_21 [1] : vector<8x8xf32> to vector<8xf32>
    %22 = vector.shape_cast %21 : vector<8xf32> to vector<8x1xf32>
    %cst_22 = arith.constant dense<0.000000e+00> : vector<8x8xf32>
    %23 = tpu.matmul %20, %11, %cst_22 {dimension_numbers = #tpu.dot_dimension_numbers<[1], [0], [0], [1], [0, 0, 1, 1], [], []>} : vector<8x8xf32>, vector<8x8xf32>, vector<8x8xf32> -> vector<8x8xf32>
    %cst_23 = arith.constant 1.000000e+00 : f32
    %24 = vector.broadcast %cst_23 : f32 to vector<8x1xf32>
    %25 = arith.divf %24, %22 : vector<8x1xf32>
    %26 = vector.broadcast %25 : vector<8x1xf32> to vector<8x8xf32>
    %27 = arith.mulf %23, %26 : vector<8x8xf32>
    %c0_24 = arith.constant 0 : index
    %c0_25 = arith.constant 0 : index
    %c0_26 = arith.constant 0 : index
    %28 = vector.load %arg9[%c0_24, %c0_25, %c0_26] : memref<1x8x64xf32, #tpu.memory_space<vmem>>, vector<1x8x64xf32>
    %29 = vector.shape_cast %28 : vector<1x8x64xf32> to vector<8x64xf32>
    %cst_27 = arith.constant dense<0.000000e+00> : vector<8x64xf32>
    %30 = tpu.matmul %27, %29, %cst_27 {dimension_numbers = #tpu.dot_dimension_numbers<[1], [0], [0], [1], [0, 0, 1, 1], [], []>} : vector<8x8xf32>, vector<8x64xf32>, vector<8x64xf32> -> vector<8x64xf32>
    %c0_i32 = arith.constant 0 : i32
    %31 = arith.cmpi eq, %arg2, %c0_i32 : i32
    %32 = arith.extui %31 : i1 to i32
    %c0_i32_28 = arith.constant 0 : i32
    %33 = arith.cmpi ne, %32, %c0_i32_28 : i32
    scf.if %33 {
      %c0_32 = arith.constant 0 : index
      %c0_33 = arith.constant 0 : index
      %40 = vector.load %arg12[%c0_32, %c0_33] : memref<8x64xf32, #tpu.memory_space<vmem>>, vector<8x64xf32>
      tpu.vector_store %arg12[%c0_32, %c0_33], %30 {strides = array<i32>} : memref<8x64xf32, #tpu.memory_space<vmem>>, vector<8x64xf32>,
    } else {
    }
    %c0_i32_29 = arith.constant 0 : i32
    %34 = arith.cmpi sgt, %arg2, %c0_i32_29 : i32
    %35 = arith.extui %34 : i1 to i32
    %c0_i32_30 = arith.constant 0 : i32
    %36 = arith.cmpi ne, %35, %c0_i32_30 : i32
    scf.if %36 {
      %c0_32 = arith.constant 0 : index
      %c0_33 = arith.constant 0 : index
      %40 = vector.load %arg12[%c0_32, %c0_33] : memref<8x64xf32, #tpu.memory_space<vmem>>, vector<8x64xf32>
      %41 = arith.addf %40, %30 : vector<8x64xf32>
      %c0_34 = arith.constant 0 : index
      %c0_35 = arith.constant 0 : index
      %42 = vector.load %arg12[%c0_34, %c0_35] : memref<8x64xf32, #tpu.memory_space<vmem>>, vector<8x64xf32>
      tpu.vector_store %arg12[%c0_34, %c0_35], %41 {strides = array<i32>} : memref<8x64xf32, #tpu.memory_space<vmem>>, vector<8x64xf32>,
    } else {
    }
    %c7_i32 = arith.constant 7 : i32
    %37 = arith.cmpi eq, %arg2, %c7_i32 : i32
    %38 = arith.extui %37 : i1 to i32
    %c0_i32_31 = arith.constant 0 : i32
    %39 = arith.cmpi ne, %38, %c0_i32_31 : i32
    scf.if %39 {
      %c0_32 = arith.constant 0 : index
      %c0_33 = arith.constant 0 : index
      %40 = vector.load %arg12[%c0_32, %c0_33] : memref<8x64xf32, #tpu.memory_space<vmem>>, vector<8x64xf32>
      %c0_34 = arith.constant 0 : index
      %c0_35 = arith.constant 0 : index
      %41 = vector.load %arg10[%c0_34, %c0_35] : memref<1x64xf32, #tpu.memory_space<vmem>>, vector<1x64xf32>
      %42 = vector.broadcast %41 : vector<1x64xf32> to vector<8x64xf32>
      %43 = arith.addf %40, %42 : vector<8x64xf32>
      %c0_36 = arith.constant 0 : index
      %c0_37 = arith.constant 0 : index
      %c0_38 = arith.constant 0 : index
      %44 = vector.load %arg11[%c0_36, %c0_37, %c0_38] : memref<1x8x64xf32, #tpu.memory_space<vmem>>, vector<1x8x64xf32>
      %45 = vector.shape_cast %44 : vector<1x8x64xf32> to vector<8x64xf32>
      %46 = vector.shape_cast %43 : vector<8x64xf32> to vector<1x8x64xf32>
      tpu.vector_store %arg11[%c0_36, %c0_37, %c0_38], %46 {strides = array<i32>} : memref<1x8x64xf32, #tpu.memory_space<vmem>>, vector<1x8x64xf32>,
    } else {
    }
    return
  }
  func.func @transform_0(%arg0: i32, %arg1: i32, %arg2: i32) -> (i32, i32, i32) {
    %c0_i32 = arith.constant 0 : i32
    %c0_i32_0 = arith.constant 0 : i32
    return %arg0, %arg1, %c0_i32 : i32, i32, i32
  }
  func.func @transform_1(%arg0: i32, %arg1: i32, %arg2: i32) -> (i32, i32, i32) {
    %c0_i32 = arith.constant 0 : i32
    %c0_i32_0 = arith.constant 0 : i32
    %c0_i32_1 = arith.constant 0 : i32
    return %arg0, %c0_i32, %c0_i32_0 : i32, i32, i32
  }
  func.func @transform_2(%arg0: i32, %arg1: i32, %arg2: i32) -> (i32, i32, i32) {
    %c0_i32 = arith.constant 0 : i32
    %c0_i32_0 = arith.constant 0 : i32
    %c0_i32_1 = arith.constant 0 : i32
    return %arg0, %c0_i32, %c0_i32_0 : i32, i32, i32
  }
  func.func @transform_3(%arg0: i32, %arg1: i32, %arg2: i32) -> (i32, i32, i32) {
    %c0_i32 = arith.constant 0 : i32
    %c0_i32_0 = arith.constant 0 : i32
    %c0_i32_1 = arith.constant 0 : i32
    return %arg2, %c0_i32, %c0_i32_0 : i32, i32, i32
  }
  func.func @transform_4(%arg0: i32, %arg1: i32, %arg2: i32) -> (i32, i32, i32) {
    %c0_i32 = arith.constant 0 : i32
    %c0_i32_0 = arith.constant 0 : i32
    %c0_i32_1 = arith.constant 0 : i32
    return %arg2, %c0_i32, %c0_i32_0 : i32, i32, i32
  }
  func.func @transform_5(%arg0: i32, %arg1: i32, %arg2: i32) -> (i32, i32, i32) {
    %c0_i32 = arith.constant 0 : i32
    %c0_i32_0 = arith.constant 0 : i32
    %c0_i32_1 = arith.constant 0 : i32
    return %arg2, %c0_i32, %c0_i32_0 : i32, i32, i32
  }
  func.func @transform_6(%arg0: i32, %arg1: i32, %arg2: i32) -> (i32, i32, i32) {
    %c0_i32 = arith.constant 0 : i32
    %c0_i32_0 = arith.constant 0 : i32
    %c0_i32_1 = arith.constant 0 : i32
    return %arg2, %c0_i32, %c0_i32_0 : i32, i32, i32
  }
  func.func @transform_7(%arg0: i32, %arg1: i32, %arg2: i32) -> (i32, i32) {
    %c0_i32 = arith.constant 0 : i32
    %c0_i32_0 = arith.constant 0 : i32
    %c0_i32_1 = arith.constant 0 : i32
    return %c0_i32, %c0_i32_0 : i32, i32
  }
  func.func @transform_8(%arg0: i32, %arg1: i32, %arg2: i32) -> (i32, i32, i32) {
    %c0_i32 = arith.constant 0 : i32
    %c0_i32_0 = arith.constant 0 : i32
    return %arg0, %arg1, %c0_i32 : i32, i32, i32
  }
}

</mosaic_0001>

<llo_original>
// kernel: tpu_custom_call.1
$region0: #{tpu_custom_call.1}
  #allocation0 [shape = 'u32[]', space=smem, size = 0x4, offset = 0x4, fixed_abs, tag = 'smem constant byte address 0x4 - core index']
  #allocation1 [shape = 'u32[144,128]{1,0:T(1,128)}', space=vmem, size = 0x12000, scoped, tag = 'internal scratch']
  #allocation2 [shape = 'f32[8,64]{1,0:T(8,128)}', space=vmem, size = 0x1000, scoped, tag = 'scratch operand']
  %s0 = inlined_call_operand.hbm [shape: f32[2,8,64], index: 0, kind: input, shape index: {}]
  %s1 = inlined_call_operand.hbm [shape: f32[2,8,64], index: 1, kind: input, shape index: {}]
  %s2 = inlined_call_operand.hbm [shape: f32[2,8,64], index: 2, kind: input, shape index: {}]
  %s3 = inlined_call_operand.hbm [shape: f32[8,64,8], index: 3, kind: input, shape index: {}]
  %s4 = inlined_call_operand.hbm [shape: f32[8,64,8], index: 4, kind: input, shape index: {}]
  %s5 = inlined_call_operand.hbm [shape: f32[8,64,8], index: 5, kind: input, shape index: {}]
  %s6 = inlined_call_operand.hbm [shape: f32[8,8,64], index: 6, kind: input, shape index: {}]
  %s7 = inlined_call_operand.hbm [shape: f32[1,64], index: 7, kind: input, shape index: {}]
  %s8 = inlined_call_operand.hbm [shape: f32[2,8,64], index: 8, kind: output, shape index: {}]
  %s9 = sld [smem:[#allocation0]]
  $region109: #{tpu_custom_call.1} parent=0
    _
  %s11 = ssub.s32 1, %s9
  %s12 = scalar_select 0, %s11, %s9
  $region1: #{tpu_custom_call.1} parent=0
    #allocation3 [shape = 'u8[8192]{0}', space=vmem, size = 0x2000, scoped, tag = 'input window, operand 0']
    #allocation4 [shape = 's32[2]{0}', space=sflag, size = 0x8, scoped, tag = 'scoped memory for tpu_custom_call.1']
    #allocation5 [shape = 's32[2]{0}', space=sflag, size = 0x8, scoped, tag = 'scoped memory for tpu_custom_call.1']
    #allocation6 [shape = 'u8[8192]{0}', space=vmem, size = 0x2000, scoped, tag = 'input window, operand 1']
    #allocation7 [shape = 's32[2]{0}', space=sflag, size = 0x8, scoped, tag = 'scoped memory for tpu_custom_call.1']
    #allocation8 [shape = 'u8[8192]{0}', space=vmem, size = 0x2000, scoped, tag = 'input window, operand 2']
    #allocation9 [shape = 'u8[65536]{0}', space=vmem, size = 0x10000, scoped, tag = 'input window, operand 3']
    #allocation10 [shape = 's32[2]{0}', space=sflag, size = 0x8, scoped, tag = 'scoped memory for tpu_custom_call.1']
    #allocation11 [shape = 'u8[65536]{0}', space=vmem, size = 0x10000, scoped, tag = 'input window, operand 4']
    #allocation12 [shape = 'u8[65536]{0}', space=vmem, size = 0x10000, scoped, tag = 'input window, operand 5']
    #allocation13 [shape = 's32[2]{0}', space=sflag, size = 0x8, scoped, tag = 'scoped memory for tpu_custom_call.1']
    #allocation14 [shape = 'u8[8192]{0}', space=vmem, size = 0x2000, scoped, tag = 'input window, operand 6']
    #allocation15 [shape = 'u8[512]{0}', space=vmem, size = 0x400, scoped, tag = 'input window, operand 7, single buffered']
    #allocation16 [shape = 's32[1]{0}', space=sflag, size = 0x4, scoped, tag = 'scoped memory for tpu_custom_call.1']
    #allocation17 [shape = 'u8[8192]{0}', space=vmem, size = 0x2000, scoped, tag = 'output window, operand 0']
    %13 = vsyncpa [#allocation4], 0
    %s14 = scalar_lea.sflag [#allocation4], 1
    %15 = vsyncpa %s14, 0
    %16 = vsyncpa [#allocation7], 0
    %s17 = scalar_lea.sflag [#allocation7], 1
    %18 = vsyncpa %s17, 0
    %19 = vsyncpa [#allocation10], 0
    %s20 = scalar_lea.sflag [#allocation10], 1
    %21 = vsyncpa %s20, 0
    %22 = vsyncpa [#allocation13], 0
    %s23 = scalar_lea.sflag [#allocation13], 1
    %24 = vsyncpa %s23, 0
    %25 = vsyncpa [#allocation16], 0
    %26 = vsyncpa [#allocation5], 0
    %s27 = scalar_lea.sflag [#allocation5], 1
    %28 = vsyncpa %s27, 0
    loop: start=0, step=1, limit=18
    $region2: #{tpu_custom_call.1} parent=1 // loop_pre_header
      _
    $region3: #{tpu_custom_call.1} parent=1 // loop_header
      %s30 = sphi 0, %s34
      %p31 = scmp.ge.s32.totalorder %s30, 18
      %s37 = sphi 0, %s56
      %s38 = sphi 0, %s52
      %s39 = sphi 0, %s48
      %s40 = sphi 0, %s37
      %s41 = sphi 0, %s38
      %s42 = sphi 0, %s39
      %s43 = sphi 0, %s40
      %s44 = sphi 0, %s41
      %s45 = sphi 0, %s42
      %s61 = sphi 0, %s63
      %s64 = sphi 0, %s61
      %s65 = sphi 0, %s64
      %s81 = sphi 0, %s65
      %s87 = sphi 0, %s89
      %s90 = sphi 0, %s87
      %s91 = sphi 0, %s90
      %s107 = sphi 0, %s91
      %s113 = sphi 0, %s115
      %s116 = sphi 0, %s113
      %s117 = sphi 0, %s116
      %s133 = sphi 0, %s117
      %s139 = sphi 0, %s141
      %s142 = sphi 0, %s139
      %s143 = sphi 0, %s142
      %s159 = sphi 0, %s143
      %s165 = sphi 0, %s167
      %s168 = sphi 0, %s165
      %s169 = sphi 0, %s168
      %s185 = sphi 0, %s169
      %s191 = sphi 0, %s193
      %s194 = sphi 0, %s191
      %s195 = sphi 0, %s194
      %s211 = sphi 0, %s195
      %s217 = sphi 0, %s219
      %s220 = sphi 0, %s217
      %s221 = sphi 0, %s220
      %s237 = sphi 0, %s221
      %s241 = sphi 0, %s241
      %s243 = sphi 0, %s241
      %s244 = sphi 0, %s243
      %s258 = sphi 0, %s244
      %s266 = sphi 0, %s268
      %s269 = sphi 0, %s266
      %s270 = sphi 0, %s269
      %s286 = sphi 0, %s270
    $region4: #{tpu_custom_call.1} parent=1 // loop_header_branch
      %33 = sbr.rel (%p31) target = $region8
    $region5: #{tpu_custom_call.1} parent=1 // loop_body
      %s35 = ssub.s32 %s30, 1
      %s36 = ssub.s32 %s30, 2
      %s46 = sadd.s32 1, %s39
      %p47 = scmp.ge.s32.totalorder %s46, 8
      %s48 = scalar_select %p47, 0, %s46
      %s49 = sadd.s32 1, %s38
      %s50 = scalar_select %p47, %s49, %s38
      %p51 = scmp.ge.s32.totalorder %s50, 1
      %s52 = scalar_select %p51, 0, %s50
      %s53 = sadd.s32 1, %s37
      %s54 = scalar_select %p51, %s53, %s37
      %p55 = scmp.ge.s32.totalorder %s54, 2
      %s56 = scalar_select %p55, 0, %s54
      %s57 = ssub.s32 %s37, %s56
      %s58 = ssub.s32 %s38, %s52
      %s59 = sor.u32 %s57, %s58
      %p60 = scmp.eq.s32.totalorder %s59, 0
      %s62 = sadd.s32 %s61, 1
      %s63 = scalar_select %p60, %s61, %s62
      %p66 = pneg %p60
      %p67 = scmp.eq.s32.totalorder %s30, 15
      %p68 = por %p66, %p67
      %p69 = scmp.ne.s32.totalorder %s61, %s64
      %p70 = scmp.eq.s32.totalorder %s30, 0
      %p71 = por %p69, %p70
      %p72 = scmp.ne.s32.totalorder %s61, %s64
      %p73 = scmp.eq.s32.totalorder %s35, 15
      %p74 = por %p72, %p73
      %p75 = scmp.ne.s32.totalorder %s64, %s65
      %p76 = scmp.eq.s32.totalorder %s35, 0
      %p77 = por %p75, %p76
      %p78 = scmp.ne.s32.totalorder %s64, %s65
      %p79 = scmp.eq.s32.totalorder %s36, 15
      %p80 = por %p78, %p79
      %p82 = scmp.ne.s32.totalorder %s65, %s81
      %p83 = scmp.eq.s32.totalorder %s36, 0
      %p84 = por %p82, %p83
      %s85 = ssub.s32 %s37, %s56
      %p86 = scmp.eq.s32.totalorder %s85, 0
      %s88 = sadd.s32 %s87, 1
      %s89 = scalar_select %p86, %s87, %s88
      %p92 = pneg %p86
      %p93 = scmp.eq.s32.totalorder %s30, 15
      %p94 = por %p92, %p93
      %p95 = scmp.ne.s32.totalorder %s87, %s90
      %p96 = scmp.eq.s32.totalorder %s30, 0
      %p97 = por %p95, %p96
      %p98 = scmp.ne.s32.totalorder %s87, %s90
      %p99 = scmp.eq.s32.totalorder %s35, 15
      %p100 = por %p98, %p99
      %p101 = scmp.ne.s32.totalorder %s90, %s91
      %p102 = scmp.eq.s32.totalorder %s35, 0
      %p103 = por %p101, %p102
      %p104 = scmp.ne.s32.totalorder %s90, %s91
      %p105 = scmp.eq.s32.totalorder %s36, 15
      %p106 = por %p104, %p105
      %p108 = scmp.ne.s32.totalorder %s91, %s107
      %p109 = scmp.eq.s32.totalorder %s36, 0
      %p110 = por %p108, %p109
      %s111 = ssub.s32 %s37, %s56
      %p112 = scmp.eq.s32.totalorder %s111, 0
      %s114 = sadd.s32 %s113, 1
      %s115 = scalar_select %p112, %s113, %s114
      %p118 = pneg %p112
      %p119 = scmp.eq.s32.totalorder %s30, 15
      %p120 = por %p118, %p119
      %p121 = scmp.ne.s32.totalorder %s113, %s116
      %p122 = scmp.eq.s32.totalorder %s30, 0
      %p123 = por %p121, %p122
      %p124 = scmp.ne.s32.totalorder %s113, %s116
      %p125 = scmp.eq.s32.totalorder %s35, 15
      %p126 = por %p124, %p125
      %p127 = scmp.ne.s32.totalorder %s116, %s117
      %p128 = scmp.eq.s32.totalorder %s35, 0
      %p129 = por %p127, %p128
      %p130 = scmp.ne.s32.totalorder %s116, %s117
      %p131 = scmp.eq.s32.totalorder %s36, 15
      %p132 = por %p130, %p131
      %p134 = scmp.ne.s32.totalorder %s117, %s133
      %p135 = scmp.eq.s32.totalorder %s36, 0
      %p136 = por %p134, %p135
      %s137 = ssub.s32 %s39, %s48
      %p138 = scmp.eq.s32.totalorder %s137, 0
      %s140 = sadd.s32 %s139, 1
      %s141 = scalar_select %p138, %s139, %s140
      %p144 = pneg %p138
      %p145 = scmp.eq.s32.totalorder %s30, 15
      %p146 = por %p144, %p145
      %p147 = scmp.ne.s32.totalorder %s139, %s142
      %p148 = scmp.eq.s32.totalorder %s30, 0
      %p149 = por %p147, %p148
      %p150 = scmp.ne.s32.totalorder %s139, %s142
      %p151 = scmp.eq.s32.totalorder %s35, 15
      %p152 = por %p150, %p151
      %p153 = scmp.ne.s32.totalorder %s142, %s143
      %p154 = scmp.eq.s32.totalorder %s35, 0
      %p155 = por %p153, %p154
      %p156 = scmp.ne.s32.totalorder %s142, %s143
      %p157 = scmp.eq.s32.totalorder %s36, 15
      %p158 = por %p156, %p157
      %p160 = scmp.ne.s32.totalorder %s143, %s159
      %p161 = scmp.eq.s32.totalorder %s36, 0
      %p162 = por %p160, %p161
      %s163 = ssub.s32 %s39, %s48
      %p164 = scmp.eq.s32.totalorder %s163, 0
      %s166 = sadd.s32 %s165, 1
      %s167 = scalar_select %p164, %s165, %s166
      %p170 = pneg %p164
      %p171 = scmp.eq.s32.totalorder %s30, 15
      %p172 = por %p170, %p171
      %p173 = scmp.ne.s32.totalorder %s165, %s168
      %p174 = scmp.eq.s32.totalorder %s30, 0
      %p175 = por %p173, %p174
      %p176 = scmp.ne.s32.totalorder %s165, %s168
      %p177 = scmp.eq.s32.totalorder %s35, 15
      %p178 = por %p176, %p177
      %p179 = scmp.ne.s32.totalorder %s168, %s169
      %p180 = scmp.eq.s32.totalorder %s35, 0
      %p181 = por %p179, %p180
      %p182 = scmp.ne.s32.totalorder %s168, %s169
      %p183 = scmp.eq.s32.totalorder %s36, 15
      %p184 = por %p182, %p183
      %p186 = scmp.ne.s32.totalorder %s169, %s185
      %p187 = scmp.eq.s32.totalorder %s36, 0
      %p188 = por %p186, %p187
      %s189 = ssub.s32 %s39, %s48
      %p190 = scmp.eq.s32.totalorder %s189, 0
      %s192 = sadd.s32 %s191, 1
      %s193 = scalar_select %p190, %s191, %s192
      %p196 = pneg %p190
      %p197 = scmp.eq.s32.totalorder %s30, 15
      %p198 = por %p196, %p197
      %p199 = scmp.ne.s32.totalorder %s191, %s194
      %p200 = scmp.eq.s32.totalorder %s30, 0
      %p201 = por %p199, %p200
      %p202 = scmp.ne.s32.totalorder %s191, %s194
      %p203 = scmp.eq.s32.totalorder %s35, 15
      %p204 = por %p202, %p203
      %p205 = scmp.ne.s32.totalorder %s194, %s195
      %p206 = scmp.eq.s32.totalorder %s35, 0
      %p207 = por %p205, %p206
      %p208 = scmp.ne.s32.totalorder %s194, %s195
      %p209 = scmp.eq.s32.totalorder %s36, 15
      %p210 = por %p208, %p209
      %p212 = scmp.ne.s32.totalorder %s195, %s211
      %p213 = scmp.eq.s32.totalorder %s36, 0
      %p214 = por %p212, %p213
      %s215 = ssub.s32 %s39, %s48
      %p216 = scmp.eq.s32.totalorder %s215, 0
      %s218 = sadd.s32 %s217, 1
      %s219 = scalar_select %p216, %s217, %s218
      %p222 = pneg %p216
      %p223 = scmp.eq.s32.totalorder %s30, 15
      %p224 = por %p222, %p223
      %p225 = scmp.ne.s32.totalorder %s217, %s220
      %p226 = scmp.eq.s32.totalorder %s30, 0
      %p227 = por %p225, %p226
      %p228 = scmp.ne.s32.totalorder %s217, %s220
      %p229 = scmp.eq.s32.totalorder %s35, 15
      %p230 = por %p228, %p229
      %p231 = scmp.ne.s32.totalorder %s220, %s221
      %p232 = scmp.eq.s32.totalorder %s35, 0
      %p233 = por %p231, %p232
      %p234 = scmp.ne.s32.totalorder %s220, %s221
      %p235 = scmp.eq.s32.totalorder %s36, 15
      %p236 = por %p234, %p235
      %p238 = scmp.ne.s32.totalorder %s221, %s237
      %p239 = scmp.eq.s32.totalorder %s36, 0
      %p240 = por %p238, %p239
      %s242 = sadd.s32 %s241, 1
      %p245 = scmp.eq.s32.totalorder %s30, 15
      %p246 = scmp.ne.s32.totalorder %s241, %s243
      %p247 = scmp.eq.s32.totalorder %s30, 0
      %p248 = por %p246, %p247
      %p249 = scmp.ne.s32.totalorder %s241, %s243
      %p250 = scmp.eq.s32.totalorder %s35, 15
      %p251 = por %p249, %p250
      %p252 = scmp.ne.s32.totalorder %s243, %s244
      %p253 = scmp.eq.s32.totalorder %s35, 0
      %p254 = por %p252, %p253
      %p255 = scmp.ne.s32.totalorder %s243, %s244
      %p256 = scmp.eq.s32.totalorder %s36, 15
      %p257 = por %p255, %p256
      %p259 = scmp.ne.s32.totalorder %s244, %s258
      %p260 = scmp.eq.s32.totalorder %s36, 0
      %p261 = por %p259, %p260
      %s262 = ssub.s32 %s37, %s56
      %s263 = ssub.s32 %s38, %s52
      %s264 = sor.u32 %s262, %s263
      %p265 = scmp.eq.s32.totalorder %s264, 0
      %s267 = sadd.s32 %s266, 1
      %s268 = scalar_select %p265, %s266, %s267
      %p271 = pneg %p265
      %p272 = scmp.eq.s32.totalorder %s30, 15
      %p273 = por %p271, %p272
      %p274 = scmp.ne.s32.totalorder %s266, %s269
      %p275 = scmp.eq.s32.totalorder %s30, 0
      %p276 = por %p274, %p275
      %p277 = scmp.ne.s32.totalorder %s266, %s269
      %p278 = scmp.eq.s32.totalorder %s35, 15
      %p279 = por %p277, %p278
      %p280 = scmp.ne.s32.totalorder %s269, %s270
      %p281 = scmp.eq.s32.totalorder %s35, 0
      %p282 = por %p280, %p281
      %p283 = scmp.ne.s32.totalorder %s269, %s270
      %p284 = scmp.eq.s32.totalorder %s36, 15
      %p285 = por %p283, %p284
      %p287 = scmp.ne.s32.totalorder %s270, %s286
      %p288 = scmp.eq.s32.totalorder %s36, 0
      %p289 = por %p287, %p288
      %p290 = scmp.le.s32.totalorder 1, %s30
      %p291 = scmp.lt.s32.totalorder %s30, 17
      %p292 = pnand %p290, %p291
      %p293 = pneg %p292
      // Predicated region
      $region9: #{tpu_custom_call.1} parent=5 // pred_check
        _
      $region10: #{tpu_custom_call.1} parent=5 // pred_check_branch
        %295 = sbr.rel (%p292) target = $region12
      $region11: #{tpu_custom_call.1} parent=5 // pred_region
        %s296 = ssub.s32 %s30, 1
        // Predicated region
        $region13: #{tpu_custom_call.1} parent=11 // pred_check
          %p297 = pneg %p254
        $region14: #{tpu_custom_call.1} parent=11 // pred_check_branch
          %299 = sbr.rel (%p297) target = $region16
        $region15: #{tpu_custom_call.1} parent=11 // pred_region
          %s301 = ssub.s32 16, 16
          %302 = vsyncadd [#allocation16], %s301
          %s304 = sshll.u32 [#allocation15], 4
          %s305 = int_to_ptr.vmem [resolvable:$true] %s304
          %307 = dma.hbm_to_vmem [thread:$0]  %s7, 16, %s305, [#allocation16]
        $region16: #{tpu_custom_call.1} parent=11 // pred_fallthru
          _
      $region12: #{tpu_custom_call.1} parent=5 // pred_fallthru
        _
      %p308 = scmp.lt.s32.totalorder %s30, 16
      // Predicated region
      $region17: #{tpu_custom_call.1} parent=5 // pred_check
        %p309 = pneg %p308
      $region18: #{tpu_custom_call.1} parent=5 // pred_check_branch
        %311 = sbr.rel (%p309) target = $region20
      $region19: #{tpu_custom_call.1} parent=5 // pred_region
        // Predicated region
        $region21: #{tpu_custom_call.1} parent=19 // pred_check
          %p312 = pneg %p71
        $region22: #{tpu_custom_call.1} parent=19 // pred_check_branch
          %314 = sbr.rel (%p312) target = $region24
        $region23: #{tpu_custom_call.1} parent=19 // pred_region
          %s315 = sand.u32 %s61, 1
          %s316 = scalar_lea.sflag [#allocation4], %s315
          %s317 = sand.u32 %s61, 1
          %s318 = smul.addr %s317, 8
          %s319 = scalar_lea.vmem [#allocation3], %s318
          %s321 = ssub.s32 128, 128
          %322 = vsyncadd %s316, %s321
          %s323 = sadd.s32 %s38, %s37
          %s324 = smul.addr %s323, 128
          %s325 = scalar_lea.hbm %s0, %s324
          %s327 = sshll.u32 %s319, 4
          %s328 = int_to_ptr.vmem [resolvable:$true] %s327
          %330 = dma.hbm_to_vmem [thread:$0]  %s325, 128, %s328, %s316
        $region24: #{tpu_custom_call.1} parent=19 // pred_fallthru
          _
        // Predicated region
        $region25: #{tpu_custom_call.1} parent=19 // pred_check
          %p331 = pneg %p97
        $region26: #{tpu_custom_call.1} parent=19 // pred_check_branch
          %333 = sbr.rel (%p331) target = $region28
        $region27: #{tpu_custom_call.1} parent=19 // pred_region
          %s334 = sand.u32 %s30, 1
          %s335 = scalar_lea.sflag [#allocation7], %s334
          %s336 = sand.u32 %s87, 1
          %s337 = smul.addr %s336, 8
          %s338 = scalar_lea.vmem [#allocation6], %s337
          %s340 = ssub.s32 128, 128
          %341 = vsyncadd %s335, %s340
          %s342 = smul.addr %s37, 128
          %s343 = scalar_lea.hbm %s1, %s342
          %s345 = sshll.u32 %s338, 4
          %s346 = int_to_ptr.vmem [resolvable:$true] %s345
          %348 = dma.hbm_to_vmem [thread:$0]  %s343, 128, %s346, %s335
        $region28: #{tpu_custom_call.1} parent=19 // pred_fallthru
          _
        // Predicated region
        $region29: #{tpu_custom_call.1} parent=19 // pred_check
          %p349 = pneg %p123
        $region30: #{tpu_custom_call.1} parent=19 // pred_check_branch
          %351 = sbr.rel (%p349) target = $region32
        $region31: #{tpu_custom_call.1} parent=19 // pred_region
          %s352 = sand.u32 %s30, 1
          %s353 = scalar_lea.sflag [#allocation7], %s352
          %s354 = sand.u32 %s113, 1
          %s355 = smul.addr %s354, 8
          %s356 = scalar_lea.vmem [#allocation8], %s355
          %s358 = ssub.s32 128, 128
          %359 = vsyncadd %s353, %s358
          %s360 = smul.addr %s37, 128
          %s361 = scalar_lea.hbm %s2, %s360
          %s363 = sshll.u32 %s356, 4
          %s364 = int_to_ptr.vmem [resolvable:$true] %s363
          %366 = dma.hbm_to_vmem [thread:$0]  %s361, 128, %s364, %s353
        $region32: #{tpu_custom_call.1} parent=19 // pred_fallthru
          _
        // Predicated region
        $region33: #{tpu_custom_call.1} parent=19 // pred_check
          %p367 = pneg %p149
        $region34: #{tpu_custom_call.1} parent=19 // pred_check_branch
          %369 = sbr.rel (%p367) target = $region36
        $region35: #{tpu_custom_call.1} parent=19 // pred_region
          %s370 = sand.u32 %s30, 1
          %s371 = scalar_lea.sflag [#allocation10], %s370
          %s372 = sand.u32 %s139, 1
          %s373 = smul.addr %s372, 64
          %s374 = scalar_lea.vmem [#allocation9], %s373
          %s376 = ssub.s32 1024, 1024
          %377 = vsyncadd %s371, %s376
          %s378 = smul.addr %s39, 8
          %s379 = smul.addr %s378, 128
          %s380 = scalar_lea.hbm %s3, %s379
          %s381 = sshll.u32 %s374, 4
          %s382 = int_to_ptr.vmem [resolvable:$true] %s381
          %387 = dma.hbm_to_vmem [thread:$0]  %s380, 1024, %s382, %s371, 128, 128, 8
        $region36: #{tpu_custom_call.1} parent=19 // pred_fallthru
          _
        // Predicated region
        $region37: #{tpu_custom_call.1} parent=19 // pred_check
          %p388 = pneg %p175
        $region38: #{tpu_custom_call.1} parent=19 // pred_check_branch
          %390 = sbr.rel (%p388) target = $region40
        $region39: #{tpu_custom_call.1} parent=19 // pred_region
          %s391 = sand.u32 %s30, 1
          %s392 = scalar_lea.sflag [#allocation10], %s391
          %s393 = sand.u32 %s165, 1
          %s394 = smul.addr %s393, 64
          %s395 = scalar_lea.vmem [#allocation11], %s394
          %s397 = ssub.s32 1024, 1024
          %398 = vsyncadd %s392, %s397
          %s399 = smul.addr %s39, 8
          %s400 = smul.addr %s399, 128
          %s401 = scalar_lea.hbm %s4, %s400
          %s402 = sshll.u32 %s395, 4
          %s403 = int_to_ptr.vmem [resolvable:$true] %s402
          %408 = dma.hbm_to_vmem [thread:$0]  %s401, 1024, %s403, %s392, 128, 128, 8
        $region40: #{tpu_custom_call.1} parent=19 // pred_fallthru
          _
        // Predicated region
        $region41: #{tpu_custom_call.1} parent=19 // pred_check
          %p409 = pneg %p201
        $region42: #{tpu_custom_call.1} parent=19 // pred_check_branch
          %411 = sbr.rel (%p409) target = $region44
        $region43: #{tpu_custom_call.1} parent=19 // pred_region
          %s412 = sand.u32 %s30, 1
          %s413 = scalar_lea.sflag [#allocation13], %s412
          %s414 = sand.u32 %s191, 1
          %s415 = smul.addr %s414, 64
          %s416 = scalar_lea.vmem [#allocation12], %s415
          %s418 = ssub.s32 1024, 1024
          %419 = vsyncadd %s413, %s418
          %s420 = smul.addr %s39, 8
          %s421 = smul.addr %s420, 128
          %s422 = scalar_lea.hbm %s5, %s421
          %s423 = sshll.u32 %s416, 4
          %s424 = int_to_ptr.vmem [resolvable:$true] %s423
          %429 = dma.hbm_to_vmem [thread:$0]  %s422, 1024, %s424, %s413, 128, 128, 8
        $region44: #{tpu_custom_call.1} parent=19 // pred_fallthru
          _
        // Predicated region
        $region45: #{tpu_custom_call.1} parent=19 // pred_check
          %p430 = pneg %p227
        $region46: #{tpu_custom_call.1} parent=19 // pred_check_branch
          %432 = sbr.rel (%p430) target = $region48
        $region47: #{tpu_custom_call.1} parent=19 // pred_region
          %s433 = sand.u32 %s30, 1
          %s434 = scalar_lea.sflag [#allocation13], %s433
          %s435 = sand.u32 %s217, 1
          %s436 = smul.addr %s435, 8
          %s437 = scalar_lea.vmem [#allocation14], %s436
          %s439 = ssub.s32 128, 128
          %440 = vsyncadd %s434, %s439
          %s441 = smul.addr %s39, 128
          %s442 = scalar_lea.hbm %s6, %s441
          %s444 = sshll.u32 %s437, 4
          %s445 = int_to_ptr.vmem [resolvable:$true] %s444
          %447 = dma.hbm_to_vmem [thread:$0]  %s442, 128, %s445, %s434
        $region48: #{tpu_custom_call.1} parent=19 // pred_fallthru
          _
      $region20: #{tpu_custom_call.1} parent=5 // pred_fallthru
        _
      %p448 = scmp.le.s32.totalorder 1, %s30
      %p449 = scmp.lt.s32.totalorder %s30, 17
      %p450 = pnand %p448, %p449
      %p451 = pneg %p450
      // Predicated region
      $region49: #{tpu_custom_call.1} parent=5 // pred_check
        _
      $region50: #{tpu_custom_call.1} parent=5 // pred_check_branch
        %453 = sbr.rel (%p450) target = $region52
      $region51: #{tpu_custom_call.1} parent=5 // pred_region
        %s454 = ssub.s32 %s30, 1
        %s455 = sand.u32 %s64, 1
        %s456 = scalar_lea.sflag [#allocation4], %s455
        %s457 = sand.u32 %s64, 1
        %s458 = smul.addr %s457, 8
        %s459 = scalar_lea.vmem [#allocation3], %s458
        // Predicated region
        $region53: #{tpu_custom_call.1} parent=51 // pred_check
          %p460 = pneg %p77
        $region54: #{tpu_custom_call.1} parent=51 // pred_check_branch
          %462 = sbr.rel (%p460) target = $region56
        $region55: #{tpu_custom_call.1} parent=51 // pred_region
          %463 = dma.done %s456, 128
        $region56: #{tpu_custom_call.1} parent=51 // pred_fallthru
          _
        %s464 = sand.u32 %s35, 1
        %s465 = scalar_lea.sflag [#allocation7], %s464
        %s466 = sand.u32 %s90, 1
        %s467 = smul.addr %s466, 8
        %s468 = scalar_lea.vmem [#allocation6], %s467
        // Predicated region
        $region57: #{tpu_custom_call.1} parent=51 // pred_check
          %p469 = pneg %p103
        $region58: #{tpu_custom_call.1} parent=51 // pred_check_branch
          %471 = sbr.rel (%p469) target = $region60
        $region59: #{tpu_custom_call.1} parent=51 // pred_region
          %472 = dma.done %s465, 128
        $region60: #{tpu_custom_call.1} parent=51 // pred_fallthru
          _
        %s473 = sand.u32 %s35, 1
        %s474 = scalar_lea.sflag [#allocation7], %s473
        %s475 = sand.u32 %s116, 1
        %s476 = smul.addr %s475, 8
        %s477 = scalar_lea.vmem [#allocation8], %s476
        // Predicated region
        $region61: #{tpu_custom_call.1} parent=51 // pred_check
          %p478 = pneg %p129
        $region62: #{tpu_custom_call.1} parent=51 // pred_check_branch
          %480 = sbr.rel (%p478) target = $region64
        $region63: #{tpu_custom_call.1} parent=51 // pred_region
          %481 = dma.done %s474, 128
        $region64: #{tpu_custom_call.1} parent=51 // pred_fallthru
          _
        %s482 = sand.u32 %s35, 1
        %s483 = scalar_lea.sflag [#allocation10], %s482
        %s484 = sand.u32 %s142, 1
        %s485 = smul.addr %s484, 64
        %s486 = scalar_lea.vmem [#allocation9], %s485
        // Predicated region
        $region65: #{tpu_custom_call.1} parent=51 // pred_check
          %p487 = pneg %p155
        $region66: #{tpu_custom_call.1} parent=51 // pred_check_branch
          %489 = sbr.rel (%p487) target = $region68
        $region67: #{tpu_custom_call.1} parent=51 // pred_region
          %490 = dma.done %s483, 1024
        $region68: #{tpu_custom_call.1} parent=51 // pred_fallthru
          _
        %s491 = sand.u32 %s35, 1
        %s492 = scalar_lea.sflag [#allocation10], %s491
        %s493 = sand.u32 %s168, 1
        %s494 = smul.addr %s493, 64
        %s495 = scalar_lea.vmem [#allocation11], %s494
        // Predicated region
        $region69: #{tpu_custom_call.1} parent=51 // pred_check
          %p496 = pneg %p181
        $region70: #{tpu_custom_call.1} parent=51 // pred_check_branch
          %498 = sbr.rel (%p496) target = $region72
        $region71: #{tpu_custom_call.1} parent=51 // pred_region
          %499 = dma.done %s492, 1024
        $region72: #{tpu_custom_call.1} parent=51 // pred_fallthru
          _
        %s500 = sand.u32 %s35, 1
        %s501 = scalar_lea.sflag [#allocation13], %s500
        %s502 = sand.u32 %s194, 1
        %s503 = smul.addr %s502, 64
        %s504 = scalar_lea.vmem [#allocation12], %s503
        // Predicated region
        $region73: #{tpu_custom_call.1} parent=51 // pred_check
          %p505 = pneg %p207
        $region74: #{tpu_custom_call.1} parent=51 // pred_check_branch
          %507 = sbr.rel (%p505) target = $region76
        $region75: #{tpu_custom_call.1} parent=51 // pred_region
          %508 = dma.done %s501, 1024
        $region76: #{tpu_custom_call.1} parent=51 // pred_fallthru
          _
        %s509 = sand.u32 %s35, 1
        %s510 = scalar_lea.sflag [#allocation13], %s509
        %s511 = sand.u32 %s220, 1
        %s512 = smul.addr %s511, 8
        %s513 = scalar_lea.vmem [#allocation14], %s512
        // Predicated region
        $region77: #{tpu_custom_call.1} parent=51 // pred_check
          %p514 = pneg %p233
        $region78: #{tpu_custom_call.1} parent=51 // pred_check_branch
          %516 = sbr.rel (%p514) target = $region80
        $region79: #{tpu_custom_call.1} parent=51 // pred_region
          %517 = dma.done %s510, 128
        $region80: #{tpu_custom_call.1} parent=51 // pred_fallthru
          _
        // Predicated region
        $region81: #{tpu_custom_call.1} parent=51 // pred_check
          %p518 = pneg %p254
        $region82: #{tpu_custom_call.1} parent=51 // pred_check_branch
          %520 = sbr.rel (%p518) target = $region84
        $region83: #{tpu_custom_call.1} parent=51 // pred_region
          %521 = dma.done [#allocation16], 16
        $region84: #{tpu_custom_call.1} parent=51 // pred_fallthru
          _
        %s522 = sand.u32 %s64, 1
        %s523 = scalar_lea.sflag [#allocation4], %s522
        %s524 = sand.u32 %s64, 1
        %s525 = smul.addr %s524, 8
        %s526 = scalar_lea.vmem [#allocation3], %s525
        %p527 = pneg %p77
        %p528 = pneg %p74
        %s529 = sand.u32 %s35, 1
        %s530 = scalar_lea.sflag [#allocation7], %s529
        %s531 = sand.u32 %s90, 1
        %s532 = smul.addr %s531, 8
        %s533 = scalar_lea.vmem [#allocation6], %s532
        %p534 = pneg %p103
        %p535 = pneg %p100
        %s536 = sand.u32 %s35, 1
        %s537 = scalar_lea.sflag [#allocation7], %s536
        %s538 = sand.u32 %s116, 1
        %s539 = smul.addr %s538, 8
        %s540 = scalar_lea.vmem [#allocation8], %s539
        %p541 = pneg %p129
        %p542 = pneg %p126
        %s543 = sand.u32 %s35, 1
        %s544 = scalar_lea.sflag [#allocation10], %s543
        %s545 = sand.u32 %s142, 1
        %s546 = smul.addr %s545, 64
        %s547 = scalar_lea.vmem [#allocation9], %s546
        %p548 = pneg %p155
        %p549 = pneg %p152
        %s550 = sand.u32 %s35, 1
        %s551 = scalar_lea.sflag [#allocation10], %s550
        %s552 = sand.u32 %s168, 1
        %s553 = smul.addr %s552, 64
        %s554 = scalar_lea.vmem [#allocation11], %s553
        %p555 = pneg %p181
        %p556 = pneg %p178
        %s557 = sand.u32 %s35, 1
        %s558 = scalar_lea.sflag [#allocation13], %s557
        %s559 = sand.u32 %s194, 1
        %s560 = smul.addr %s559, 64
        %s561 = scalar_lea.vmem [#allocation12], %s560
        %p562 = pneg %p207
        %p563 = pneg %p204
        %s564 = sand.u32 %s35, 1
        %s565 = scalar_lea.sflag [#allocation13], %s564
        %s566 = sand.u32 %s220, 1
        %s567 = smul.addr %s566, 8
        %s568 = scalar_lea.vmem [#allocation14], %s567
        %p569 = pneg %p233
        %p570 = pneg %p230
        %p571 = pneg %p254
        %p572 = pneg %p251
        %p573 = pneg %p282
        %p574 = pneg %p279
        %s575 = sand.u32 %s269, 1
        %s576 = scalar_lea.sflag [#allocation5], %s575
        %s577 = sand.u32 %s269, 1
        %s578 = smul.addr %s577, 8
        %s579 = scalar_lea.vmem [#allocation17], %s578
        %v580 = vld [vmem:[%s459] sm:$0xff]
        %v581 = vld [vmem:[%s468] sm:$0xff]
        %v582 = vld [vmem:[%s495] sm:$0xff]
        %v583 = vld [vmem:[%s495 + $0x8] sm:$0xff]
        %v584 = vld [vmem:[%s495 + $0x10] sm:$0xff]
        %v585 = vld [vmem:[%s495 + $0x18] sm:$0xff]
        %v586 = vld [vmem:[%s495 + $0x20] sm:$0xff]
        %v587 = vld [vmem:[%s495 + $0x28] sm:$0xff]
        %v588 = vld [vmem:[%s495 + $0x30] sm:$0xff]
        %v589 = vld [vmem:[%s495 + $0x38] sm:$0xff]
        %vm590 = vcmask 523264
        %v592 = vsel %vm590, %v581, 0
        %594 = vmatprep.subr.mxu0 0.0
        %595 = vmatpush1.msra.mxu0 %v582
        %596 = vmatprep.subr.mxu0 0.0
        %597 = vmatpush1.msra.mxu0 %v583
        %598 = vmatprep.subr.mxu0 0.0
        %599 = vmatpush1.msra.mxu0 %v584
        %600 = vmatprep.subr.mxu0 0.0
        %601 = vmatpush1.msra.mxu0 %v585
        %602 = vmatprep.subr.mxu0 0.0
        %603 = vmatpush1.msra.mxu0 %v586
        %604 = vmatprep.subr.mxu0 0.0
        %605 = vmatpush1.msra.mxu0 %v587
        %606 = vmatprep.subr.mxu0 0.0
        %607 = vmatpush1.msra.mxu0 %v588
        %608 = vmatprep.subr.mxu0 0.0
        %609 = vmatpush1.msra.mxu0 %v589
        %610 = vmatprep.subr.mxu0 0.0
        %611 = vmatpush1.msra.mxu0 0.0
        %612 = vmatprep.subr.mxu0 0.0
        %613 = vmatpush1.msra.mxu0 0.0
        %614 = vmatprep.subr.mxu0 0.0
        %615 = vmatpush1.msra.mxu0 0.0
        %616 = vmatprep.subr.mxu0 0.0
        %617 = vmatpush1.msra.mxu0 0.0
        %618 = vmatprep.subr.mxu0 0.0
        %619 = vmatpush1.msra.mxu0 0.0
        %620 = vmatprep.subr.mxu0 0.0
        %621 = vmatpush1.msra.mxu0 0.0
        %622 = vmatprep.subr.mxu0 0.0
        %623 = vmatpush1.msra.mxu0 0.0
        %624 = vmatprep.subr.mxu0 0.0
        %625 = vmatpush1.msra.mxu0 0.0
        %626 = vmatprep.subr.mxu0 0.0
        %627 = vmatpush1.msra.mxu0 0.0
        %628 = vmatprep.subr.mxu0 0.0
        %629 = vmatpush1.msra.mxu0 0.0
        %630 = vmatprep.subr.mxu0 0.0
        %631 = vmatpush1.msra.mxu0 0.0
        %632 = vmatprep.subr.mxu0 0.0
        %633 = vmatpush1.msra.mxu0 0.0
        %634 = vmatprep.subr.mxu0 0.0
        %635 = vmatpush1.msra.mxu0 0.0
        %636 = vmatprep.subr.mxu0 0.0
        %637 = vmatpush1.msra.mxu0 0.0
        %638 = vmatprep.subr.mxu0 0.0
        %639 = vmatpush1.msra.mxu0 0.0
        %640 = vmatprep.subr.mxu0 0.0
        %641 = vmatpush1.msra.mxu0 0.0
        %642 = vmatprep.subr.mxu0 0.0
        %643 = vmatpush1.msra.mxu0 0.0
        %644 = vmatprep.subr.mxu0 0.0
        %645 = vmatpush1.msra.mxu0 0.0
        %646 = vmatprep.subr.mxu0 0.0
        %647 = vmatpush1.msra.mxu0 0.0
        %648 = vmatprep.subr.mxu0 0.0
        %649 = vmatpush1.msra.mxu0 0.0
        %650 = vmatprep.subr.mxu0 0.0
        %651 = vmatpush1.msra.mxu0 0.0
        %652 = vmatprep.subr.mxu0 0.0
        %653 = vmatpush1.msra.mxu0 0.0
        %654 = vmatprep.subr.mxu0 0.0
        %655 = vmatpush1.msra.mxu0 0.0
        %656 = vmatprep.subr.mxu0 0.0
        %657 = vmatpush1.msra.mxu0 0.0
        %658 = vmatprep.mubr.f32.mxu0 0.0
        %659 = vmatmul.mubr.f32.gmra.mrb[0].mxu0 %v592
        %v660 = vpop.f32.mrb[0].mxu0
        %v661 = vadd.f32 0.0, %v660
        %v662 = vpop.f32.mrb[0].mxu0
        %663 = vdwg.mxu0
        %v664 = vld [vmem:[%s477] sm:$0xff]
        %v665 = vld [vmem:[%s504] sm:$0xff]
        %v666 = vld [vmem:[%s504 + $0x8] sm:$0xff]
        %v667 = vld [vmem:[%s504 + $0x10] sm:$0xff]
        %v668 = vld [vmem:[%s504 + $0x18] sm:$0xff]
        %v669 = vld [vmem:[%s504 + $0x20] sm:$0xff]
        %v670 = vld [vmem:[%s504 + $0x28] sm:$0xff]
        %v671 = vld [vmem:[%s504 + $0x30] sm:$0xff]
        %v672 = vld [vmem:[%s504 + $0x38] sm:$0xff]
        %v674 = vsel %vm590, %v664, 0
        %676 = vmatprep.subr.mxu0 0.0
        %677 = vmatpush1.msra.mxu0 %v665
        %678 = vmatprep.subr.mxu0 0.0
        %679 = vmatpush1.msra.mxu0 %v666
        %680 = vmatprep.subr.mxu0 0.0
        %681 = vmatpush1.msra.mxu0 %v667
        %682 = vmatprep.subr.mxu0 0.0
        %683 = vmatpush1.msra.mxu0 %v668
        %684 = vmatprep.subr.mxu0 0.0
        %685 = vmatpush1.msra.mxu0 %v669
        %686 = vmatprep.subr.mxu0 0.0
        %687 = vmatpush1.msra.mxu0 %v670
        %688 = vmatprep.subr.mxu0 0.0
        %689 = vmatpush1.msra.mxu0 %v671
        %690 = vmatprep.subr.mxu0 0.0
        %691 = vmatpush1.msra.mxu0 %v672
        %692 = vmatprep.subr.mxu0 0.0
        %693 = vmatpush1.msra.mxu0 0.0
        %694 = vmatprep.subr.mxu0 0.0
        %695 = vmatpush1.msra.mxu0 0.0
        %696 = vmatprep.subr.mxu0 0.0
        %697 = vmatpush1.msra.mxu0 0.0
        %698 = vmatprep.subr.mxu0 0.0
        %699 = vmatpush1.msra.mxu0 0.0
        %700 = vmatprep.subr.mxu0 0.0
        %701 = vmatpush1.msra.mxu0 0.0
        %702 = vmatprep.subr.mxu0 0.0
        %703 = vmatpush1.msra.mxu0 0.0
        %704 = vmatprep.subr.mxu0 0.0
        %705 = vmatpush1.msra.mxu0 0.0
        %706 = vmatprep.subr.mxu0 0.0
        %707 = vmatpush1.msra.mxu0 0.0
        %708 = vmatprep.subr.mxu0 0.0
        %709 = vmatpush1.msra.mxu0 0.0
        %710 = vmatprep.subr.mxu0 0.0
        %711 = vmatpush1.msra.mxu0 0.0
        %712 = vmatprep.subr.mxu0 0.0
        %713 = vmatpush1.msra.mxu0 0.0
        %714 = vmatprep.subr.mxu0 0.0
        %715 = vmatpush1.msra.mxu0 0.0
        %716 = vmatprep.subr.mxu0 0.0
        %717 = vmatpush1.msra.mxu0 0.0
        %718 = vmatprep.subr.mxu0 0.0
        %719 = vmatpush1.msra.mxu0 0.0
        %720 = vmatprep.subr.mxu0 0.0
        %721 = vmatpush1.msra.mxu0 0.0
        %722 = vmatprep.subr.mxu0 0.0
        %723 = vmatpush1.msra.mxu0 0.0
        %724 = vmatprep.subr.mxu0 0.0
        %725 = vmatpush1.msra.mxu0 0.0
        %726 = vmatprep.subr.mxu0 0.0
        %727 = vmatpush1.msra.mxu0 0.0
        %728 = vmatprep.subr.mxu0 0.0
        %729 = vmatpush1.msra.mxu0 0.0
        %730 = vmatprep.subr.mxu0 0.0
        %731 = vmatpush1.msra.mxu0 0.0
        %732 = vmatprep.subr.mxu0 0.0
        %733 = vmatpush1.msra.mxu0 0.0
        %734 = vmatprep.subr.mxu0 0.0
        %735 = vmatpush1.msra.mxu0 0.0
        %736 = vmatprep.subr.mxu0 0.0
        %737 = vmatpush1.msra.mxu0 0.0
        %738 = vmatprep.subr.mxu0 0.0
        %739 = vmatpush1.msra.mxu0 0.0
        %740 = vmatprep.mubr.f32.mxu0 0.0
        %741 = vmatmul.mubr.f32.gmra.mrb[0].mxu0 %v674
        %v742 = vpop.f32.mrb[0].mxu0
        %v743 = vadd.f32 0.0, %v742
        %v744 = vpop.f32.mrb[0].mxu0
        %745 = vdwg.mxu0
        %v746 = vld [vmem:[%s486] sm:$0xff]
        %v747 = vld [vmem:[%s486 + $0x8] sm:$0xff]
        %v748 = vld [vmem:[%s486 + $0x10] sm:$0xff]
        %v749 = vld [vmem:[%s486 + $0x18] sm:$0xff]
        %v750 = vld [vmem:[%s486 + $0x20] sm:$0xff]
        %v751 = vld [vmem:[%s486 + $0x28] sm:$0xff]
        %v752 = vld [vmem:[%s486 + $0x30] sm:$0xff]
        %v753 = vld [vmem:[%s486 + $0x38] sm:$0xff]
        %v755 = vsel %vm590, %v580, 0
        %757 = vmatprep.subr.mxu0 0.0
        %758 = vmatpush1.msra.mxu0 %v746
        %759 = vmatprep.subr.mxu0 0.0
        %760 = vmatpush1.msra.mxu0 %v747
        %761 = vmatprep.subr.mxu0 0.0
        %762 = vmatpush1.msra.mxu0 %v748
        %763 = vmatprep.subr.mxu0 0.0
        %764 = vmatpush1.msra.mxu0 %v749
        %765 = vmatprep.subr.mxu0 0.0
        %766 = vmatpush1.msra.mxu0 %v750
        %767 = vmatprep.subr.mxu0 0.0
        %768 = vmatpush1.msra.mxu0 %v751
        %769 = vmatprep.subr.mxu0 0.0
        %770 = vmatpush1.msra.mxu0 %v752
        %771 = vmatprep.subr.mxu0 0.0
        %772 = vmatpush1.msra.mxu0 %v753
        %773 = vmatprep.subr.mxu0 0.0
        %774 = vmatpush1.msra.mxu0 0.0
        %775 = vmatprep.subr.mxu0 0.0
        %776 = vmatpush1.msra.mxu0 0.0
        %777 = vmatprep.subr.mxu0 0.0
        %778 = vmatpush1.msra.mxu0 0.0
        %779 = vmatprep.subr.mxu0 0.0
        %780 = vmatpush1.msra.mxu0 0.0
        %781 = vmatprep.subr.mxu0 0.0
        %782 = vmatpush1.msra.mxu0 0.0
        %783 = vmatprep.subr.mxu0 0.0
        %784 = vmatpush1.msra.mxu0 0.0
        %785 = vmatprep.subr.mxu0 0.0
        %786 = vmatpush1.msra.mxu0 0.0
        %787 = vmatprep.subr.mxu0 0.0
        %788 = vmatpush1.msra.mxu0 0.0
        %789 = vmatprep.subr.mxu0 0.0
        %790 = vmatpush1.msra.mxu0 0.0
        %791 = vmatprep.subr.mxu0 0.0
        %792 = vmatpush1.msra.mxu0 0.0
        %793 = vmatprep.subr.mxu0 0.0
        %794 = vmatpush1.msra.mxu0 0.0
        %795 = vmatprep.subr.mxu0 0.0
        %796 = vmatpush1.msra.mxu0 0.0
        %797 = vmatprep.subr.mxu0 0.0
        %798 = vmatpush1.msra.mxu0 0.0
        %799 = vmatprep.subr.mxu0 0.0
        %800 = vmatpush1.msra.mxu0 0.0
        %801 = vmatprep.subr.mxu0 0.0
        %802 = vmatpush1.msra.mxu0 0.0
        %803 = vmatprep.subr.mxu0 0.0
        %804 = vmatpush1.msra.mxu0 0.0
        %805 = vmatprep.subr.mxu0 0.0
        %806 = vmatpush1.msra.mxu0 0.0
        %807 = vmatprep.subr.mxu0 0.0
        %808 = vmatpush1.msra.mxu0 0.0
        %809 = vmatprep.subr.mxu0 0.0
        %810 = vmatpush1.msra.mxu0 0.0
        %811 = vmatprep.subr.mxu0 0.0
        %812 = vmatpush1.msra.mxu0 0.0
        %813 = vmatprep.subr.mxu0 0.0
        %814 = vmatpush1.msra.mxu0 0.0
        %815 = vmatprep.subr.mxu0 0.0
        %816 = vmatpush1.msra.mxu0 0.0
        %817 = vmatprep.subr.mxu0 0.0
        %818 = vmatpush1.msra.mxu0 0.0
        %819 = vmatprep.subr.mxu0 0.0
        %820 = vmatpush1.msra.mxu0 0.0
        %821 = vmatprep.mubr.f32.mxu0 0.0
        %822 = vmatmul.mubr.f32.gmra.mrb[0].mxu0 %v755
        %v823 = vpop.f32.mrb[0].mxu0
        %v824 = vadd.f32 0.0, %v823
        %v825 = vpop.f32.mrb[0].mxu0
        %826 = vdwg.mxu0
        %vm827 = vcmask 64512
        %v829 = vsel %vm827, %v824, 0
        %v832 = vsel %vm827, %v661, 0
        %834 = vmatprep.subr.mxu0 0.0
        %835 = vmatpush1.xpose.msra.mxu0 %v832
        %836 = vmatprep.subr.mxu0 0.0
        %837 = vmatpush1.xpose.msra.mxu0 0.0
        %838 = vmatprep.subr.mxu0 0.0
        %839 = vmatpush1.xpose.msra.mxu0 0.0
        %840 = vmatprep.subr.mxu0 0.0
        %841 = vmatpush1.xpose.msra.mxu0 0.0
        %842 = vmatprep.subr.mxu0 0.0
        %843 = vmatpush1.xpose.msra.mxu0 0.0
        %844 = vmatprep.subr.mxu0 0.0
        %845 = vmatpush1.xpose.msra.mxu0 0.0
        %846 = vmatprep.subr.mxu0 0.0
        %847 = vmatpush1.xpose.msra.mxu0 0.0
        %848 = vmatprep.subr.mxu0 0.0
        %849 = vmatpush1.xpose.msra.mxu0 0.0
        %850 = vmatprep.subr.mxu0 0.0
        %851 = vmatpush1.xpose.msra.mxu0 0.0
        %852 = vmatprep.subr.mxu0 0.0
        %853 = vmatpush1.xpose.msra.mxu0 0.0
        %854 = vmatprep.subr.mxu0 0.0
        %855 = vmatpush1.xpose.msra.mxu0 0.0
        %856 = vmatprep.subr.mxu0 0.0
        %857 = vmatpush1.xpose.msra.mxu0 0.0
        %858 = vmatprep.subr.mxu0 0.0
        %859 = vmatpush1.xpose.msra.mxu0 0.0
        %860 = vmatprep.subr.mxu0 0.0
        %861 = vmatpush1.xpose.msra.mxu0 0.0
        %862 = vmatprep.subr.mxu0 0.0
        %863 = vmatpush1.xpose.msra.mxu0 0.0
        %864 = vmatprep.subr.mxu0 0.0
        %865 = vmatpush1.xpose.msra.mxu0 0.0
        %866 = vmatprep.subr.mxu0 0.0
        %867 = vmatpush1.xpose.msra.mxu0 0.0
        %868 = vmatprep.subr.mxu0 0.0
        %869 = vmatpush1.xpose.msra.mxu0 0.0
        %870 = vmatprep.subr.mxu0 0.0
        %871 = vmatpush1.xpose.msra.mxu0 0.0
        %872 = vmatprep.subr.mxu0 0.0
        %873 = vmatpush1.xpose.msra.mxu0 0.0
        %874 = vmatprep.subr.mxu0 0.0
        %875 = vmatpush1.xpose.msra.mxu0 0.0
        %876 = vmatprep.subr.mxu0 0.0
        %877 = vmatpush1.xpose.msra.mxu0 0.0
        %878 = vmatprep.subr.mxu0 0.0
        %879 = vmatpush1.xpose.msra.mxu0 0.0
        %880 = vmatprep.subr.mxu0 0.0
        %881 = vmatpush1.xpose.msra.mxu0 0.0
        %882 = vmatprep.subr.mxu0 0.0
        %883 = vmatpush1.xpose.msra.mxu0 0.0
        %884 = vmatprep.subr.mxu0 0.0
        %885 = vmatpush1.xpose.msra.mxu0 0.0
        %886 = vmatprep.subr.mxu0 0.0
        %887 = vmatpush1.xpose.msra.mxu0 0.0
        %888 = vmatprep.subr.mxu0 0.0
        %889 = vmatpush1.xpose.msra.mxu0 0.0
        %890 = vmatprep.subr.mxu0 0.0
        %891 = vmatpush1.xpose.msra.mxu0 0.0
        %892 = vmatprep.subr.mxu0 0.0
        %893 = vmatpush1.xpose.msra.mxu0 0.0
        %894 = vmatprep.subr.mxu0 0.0
        %895 = vmatpush1.xpose.msra.mxu0 0.0
        %896 = vmatprep.subr.mxu0 0.0
        %897 = vmatpush1.xpose.msra.mxu0 0.0
        %898 = vmatprep.mubr.f32.mxu0 0.0
        %899 = vmatmul.mubr.f32.gmra.mrb[0].mxu0 %v829
        %v900 = vpop.f32.mrb[0].mxu0
        %v901 = vadd.f32 0.0, %v900
        %v902 = vpop.f32.mrb[0].mxu0
        %903 = vdwg.mxu0
        %v904 = vsel %vm827, %v901, -inf
        %905 = vmax.xlane.f32.xlu0 %v904
        %v906 = vpop.xlane.xlu0 %905
        %v907 = vsub.f32 %v901, %v906
        %v908 = vmul.f32 %v907, 1.442695
        %v909 = vpow.pop %v908
        %v910 = vsel %vm827, %v909, 0.0
        %911 = vadd.xlane.f32.xlu0 %v910
        %v912 = vpop.xlane.xlu0 %911
        %v914 = vsel %vm827, %v909, 0
        %916 = vmatprep.subr.mxu0 0.0
        %917 = vmatpush1.msra.mxu0 %v743
        %918 = vmatprep.subr.mxu0 0.0
        %919 = vmatpush1.msra.mxu0 0.0
        %920 = vmatprep.subr.mxu0 0.0
        %921 = vmatpush1.msra.mxu0 0.0
        %922 = vmatprep.subr.mxu0 0.0
        %923 = vmatpush1.msra.mxu0 0.0
        %924 = vmatprep.subr.mxu0 0.0
        %925 = vmatpush1.msra.mxu0 0.0
        %926 = vmatprep.subr.mxu0 0.0
        %927 = vmatpush1.msra.mxu0 0.0
        %928 = vmatprep.subr.mxu0 0.0
        %929 = vmatpush1.msra.mxu0 0.0
        %930 = vmatprep.subr.mxu0 0.0
        %931 = vmatpush1.msra.mxu0 0.0
        %932 = vmatprep.subr.mxu0 0.0
        %933 = vmatpush1.msra.mxu0 0.0
        %934 = vmatprep.subr.mxu0 0.0
        %935 = vmatpush1.msra.mxu0 0.0
        %936 = vmatprep.subr.mxu0 0.0
        %937 = vmatpush1.msra.mxu0 0.0
        %938 = vmatprep.subr.mxu0 0.0
        %939 = vmatpush1.msra.mxu0 0.0
        %940 = vmatprep.subr.mxu0 0.0
        %941 = vmatpush1.msra.mxu0 0.0
        %942 = vmatprep.subr.mxu0 0.0
        %943 = vmatpush1.msra.mxu0 0.0
        %944 = vmatprep.subr.mxu0 0.0
        %945 = vmatpush1.msra.mxu0 0.0
        %946 = vmatprep.subr.mxu0 0.0
        %947 = vmatpush1.msra.mxu0 0.0
        %948 = vmatprep.subr.mxu0 0.0
        %949 = vmatpush1.msra.mxu0 0.0
        %950 = vmatprep.subr.mxu0 0.0
        %951 = vmatpush1.msra.mxu0 0.0
        %952 = vmatprep.subr.mxu0 0.0
        %953 = vmatpush1.msra.mxu0 0.0
        %954 = vmatprep.subr.mxu0 0.0
        %955 = vmatpush1.msra.mxu0 0.0
        %956 = vmatprep.subr.mxu0 0.0
        %957 = vmatpush1.msra.mxu0 0.0
        %958 = vmatprep.subr.mxu0 0.0
        %959 = vmatpush1.msra.mxu0 0.0
        %960 = vmatprep.subr.mxu0 0.0
        %961 = vmatpush1.msra.mxu0 0.0
        %962 = vmatprep.subr.mxu0 0.0
        %963 = vmatpush1.msra.mxu0 0.0
        %964 = vmatprep.subr.mxu0 0.0
        %965 = vmatpush1.msra.mxu0 0.0
        %966 = vmatprep.subr.mxu0 0.0
        %967 = vmatpush1.msra.mxu0 0.0
        %968 = vmatprep.subr.mxu0 0.0
        %969 = vmatpush1.msra.mxu0 0.0
        %970 = vmatprep.subr.mxu0 0.0
        %971 = vmatpush1.msra.mxu0 0.0
        %972 = vmatprep.subr.mxu0 0.0
        %973 = vmatpush1.msra.mxu0 0.0
        %974 = vmatprep.subr.mxu0 0.0
        %975 = vmatpush1.msra.mxu0 0.0
        %976 = vmatprep.subr.mxu0 0.0
        %977 = vmatpush1.msra.mxu0 0.0
        %978 = vmatprep.subr.mxu0 0.0
        %979 = vmatpush1.msra.mxu0 0.0
        %980 = vmatprep.mubr.f32.mxu0 0.0
        %981 = vmatmul.mubr.f32.gmra.mrb[0].mxu0 %v914
        %v982 = vpop.f32.mrb[0].mxu0
        %v983 = vadd.f32 0.0, %v982
        %v984 = vpop.f32.mrb[0].mxu0
        %985 = vdwg.mxu0
        %v986 = vrcp.pop %v912
        %v987 = vmul.f32 1.0, %v986
        %v988 = vmul.f32 %v983, %v987
        %v989 = vld [vmem:[%s513] sm:$0xff]
        %v991 = vsel %vm827, %v988, 0
        %993 = vmatprep.subr.mxu0 0.0
        %994 = vmatpush1.msra.mxu0 %v989
        %995 = vmatprep.subr.mxu0 0.0
        %996 = vmatpush1.msra.mxu0 0.0
        %997 = vmatprep.subr.mxu0 0.0
        %998 = vmatpush1.msra.mxu0 0.0
        %999 = vmatprep.subr.mxu0 0.0
        %1000 = vmatpush1.msra.mxu0 0.0
        %1001 = vmatprep.subr.mxu0 0.0
        %1002 = vmatpush1.msra.mxu0 0.0
        %1003 = vmatprep.subr.mxu0 0.0
        %1004 = vmatpush1.msra.mxu0 0.0
        %1005 = vmatprep.subr.mxu0 0.0
        %1006 = vmatpush1.msra.mxu0 0.0
        %1007 = vmatprep.subr.mxu0 0.0
        %1008 = vmatpush1.msra.mxu0 0.0
        %1009 = vmatprep.subr.mxu0 0.0
        %1010 = vmatpush1.msra.mxu0 0.0
        %1011 = vmatprep.subr.mxu0 0.0
        %1012 = vmatpush1.msra.mxu0 0.0
        %1013 = vmatprep.subr.mxu0 0.0
        %1014 = vmatpush1.msra.mxu0 0.0
        %1015 = vmatprep.subr.mxu0 0.0
        %1016 = vmatpush1.msra.mxu0 0.0
        %1017 = vmatprep.subr.mxu0 0.0
        %1018 = vmatpush1.msra.mxu0 0.0
        %1019 = vmatprep.subr.mxu0 0.0
        %1020 = vmatpush1.msra.mxu0 0.0
        %1021 = vmatprep.subr.mxu0 0.0
        %1022 = vmatpush1.msra.mxu0 0.0
        %1023 = vmatprep.subr.mxu0 0.0
        %1024 = vmatpush1.msra.mxu0 0.0
        %1025 = vmatprep.subr.mxu0 0.0
        %1026 = vmatpush1.msra.mxu0 0.0
        %1027 = vmatprep.subr.mxu0 0.0
        %1028 = vmatpush1.msra.mxu0 0.0
        %1029 = vmatprep.subr.mxu0 0.0
        %1030 = vmatpush1.msra.mxu0 0.0
        %1031 = vmatprep.subr.mxu0 0.0
        %1032 = vmatpush1.msra.mxu0 0.0
        %1033 = vmatprep.subr.mxu0 0.0
        %1034 = vmatpush1.msra.mxu0 0.0
        %1035 = vmatprep.subr.mxu0 0.0
        %1036 = vmatpush1.msra.mxu0 0.0
        %1037 = vmatprep.subr.mxu0 0.0
        %1038 = vmatpush1.msra.mxu0 0.0
        %1039 = vmatprep.subr.mxu0 0.0
        %1040 = vmatpush1.msra.mxu0 0.0
        %1041 = vmatprep.subr.mxu0 0.0
        %1042 = vmatpush1.msra.mxu0 0.0
        %1043 = vmatprep.subr.mxu0 0.0
        %1044 = vmatpush1.msra.mxu0 0.0
        %1045 = vmatprep.subr.mxu0 0.0
        %1046 = vmatpush1.msra.mxu0 0.0
        %1047 = vmatprep.subr.mxu0 0.0
        %1048 = vmatpush1.msra.mxu0 0.0
        %1049 = vmatprep.subr.mxu0 0.0
        %1050 = vmatpush1.msra.mxu0 0.0
        %1051 = vmatprep.subr.mxu0 0.0
        %1052 = vmatpush1.msra.mxu0 0.0
        %1053 = vmatprep.subr.mxu0 0.0
        %1054 = vmatpush1.msra.mxu0 0.0
        %1055 = vmatprep.subr.mxu0 0.0
        %1056 = vmatpush1.msra.mxu0 0.0
        %1057 = vmatprep.mubr.f32.mxu0 0.0
        %1058 = vmatmul.mubr.f32.gmra.mrb[0].mxu0 %v991
        %v1059 = vpop.f32.mrb[0].mxu0
        %v1060 = vadd.f32 0.0, %v1059
        %v1061 = vpop.f32.mrb[0].mxu0
        %1062 = vdwg.mxu0
        %p1063 = scmp.eq.s32.totalorder %s42, 0
        // Predicated region
        $region85: #{tpu_custom_call.1} parent=51 // pred_check
          %p1064 = pneg %p1063
        $region86: #{tpu_custom_call.1} parent=51 // pred_check_branch
          %1066 = sbr.rel (%p1064) target = $region88
        $region87: #{tpu_custom_call.1} parent=51 // pred_region
          %1067 = vst.msk [vmem:[#allocation2] sm:$0xff] %vm590, %v1060
        $region88: #{tpu_custom_call.1} parent=51 // pred_fallthru
          _
        %p1068 = scmp.gt.s32.totalorder %s42, 0
        // Predicated region
        $region89: #{tpu_custom_call.1} parent=51 // pred_check
          %p1069 = pneg %p1068
        $region90: #{tpu_custom_call.1} parent=51 // pred_check_branch
          %1071 = sbr.rel (%p1069) target = $region92
        $region91: #{tpu_custom_call.1} parent=51 // pred_region
          %v1072 = vld [vmem:[#allocation2] sm:$0xff]
          %v1073 = vadd.f32 %v1072, %v1060
          %1074 = vst.msk [vmem:[#allocation2] sm:$0xff] %vm590, %v1073
        $region92: #{tpu_custom_call.1} parent=51 // pred_fallthru
          _
        %p1075 = scmp.eq.s32.totalorder %s42, 7
        // Predicated region
        $region93: #{tpu_custom_call.1} parent=51 // pred_check
          %p1076 = pneg %p1075
        $region94: #{tpu_custom_call.1} parent=51 // pred_check_branch
          %1078 = sbr.rel (%p1076) target = $region96
        $region95: #{tpu_custom_call.1} parent=51 // pred_region
          %v1079 = vld [vmem:[#allocation2] sm:$0xff]
          %v1080 = vld [vmem:[#allocation15] sm:$0x1]
          %v1082 = vlaneseq
          %v1083 = vshrl.u32 %v1082, 7
          %v1084 = vsub.s32 0, %v1083
          %v1085 = vrot.slane %v1080, %v1084
          %v1087 = vadd.f32 %v1079, %v1085
          %1088 = vst.msk [vmem:[%s579] sm:$0xff] %vm590, %v1087
        $region96: #{tpu_custom_call.1} parent=51 // pred_fallthru
          _
        %s1089 = sand.u32 %s269, 1
        %s1090 = scalar_lea.sflag [#allocation5], %s1089
        %s1091 = sand.u32 %s269, 1
        %s1092 = smul.addr %s1091, 8
        %s1093 = scalar_lea.vmem [#allocation17], %s1092
        // Predicated region
        $region97: #{tpu_custom_call.1} parent=51 // pred_check
          %p1094 = pneg %p279
        $region98: #{tpu_custom_call.1} parent=51 // pred_check_branch
          %1096 = sbr.rel (%p1094) target = $region100
        $region99: #{tpu_custom_call.1} parent=51 // pred_region
          %s1098 = ssub.s32 128, 128
          %1099 = vsyncadd %s1090, %s1098
          %s1100 = sadd.s32 %s41, %s40
          %s1101 = smul.addr %s1100, 128
          %s1102 = scalar_lea.hbm %s8, %s1101
          %s1104 = sshll.u32 %s1093, 4
          %s1105 = int_to_ptr.vmem [resolvable:$true] %s1104
          %1107 = dma.vmem_to_hbm [thread:$0]  %s1105, 128, %s1102, %s1090
        $region100: #{tpu_custom_call.1} parent=51 // pred_fallthru
          _
      $region52: #{tpu_custom_call.1} parent=5 // pred_fallthru
        _
      %p1108 = scmp.le.s32.totalorder 2, %s30
      // Predicated region
      $region101: #{tpu_custom_call.1} parent=5 // pred_check
        %p1109 = pneg %p1108
      $region102: #{tpu_custom_call.1} parent=5 // pred_check_branch
        %1111 = sbr.rel (%p1109) target = $region104
      $region103: #{tpu_custom_call.1} parent=5 // pred_region
        %s1112 = ssub.s32 %s30, 2
        // Predicated region
        $region105: #{tpu_custom_call.1} parent=103 // pred_check
          %p1113 = pneg %p285
        $region106: #{tpu_custom_call.1} parent=103 // pred_check_branch
          %1115 = sbr.rel (%p1113) target = $region108
        $region107: #{tpu_custom_call.1} parent=103 // pred_region
          %s1116 = sand.u32 %s270, 1
          %s1117 = scalar_lea.sflag [#allocation5], %s1116
          %s1118 = sand.u32 %s270, 1
          %s1119 = smul.addr %s1118, 8
          %s1120 = scalar_lea.vmem [#allocation17], %s1119
          %1121 = dma.done %s1117, 128
        $region108: #{tpu_custom_call.1} parent=103 // pred_fallthru
          _
      $region104: #{tpu_custom_call.1} parent=5 // pred_fallthru
        _
    $region6: #{tpu_custom_call.1} parent=1 // loop_footer
      %s34 = sadd.s32 1, %s30
    $region7: #{tpu_custom_call.1} parent=1 // loop_footer_branch
      %29 = sbr.rel target = $region3
    $region8: #{tpu_custom_call.1} parent=1 // loop_exit
      _
    %1122 = vsyncpa [#allocation4], 1
    %s1123 = scalar_lea.sflag [#allocation4], 1
    %1124 = vsyncpa %s1123, 1
    %1125 = vsyncpa [#allocation7], 1
    %s1126 = scalar_lea.sflag [#allocation7], 1
    %1127 = vsyncpa %s1126, 1
    %1128 = vsyncpa [#allocation10], 1
    %s1129 = scalar_lea.sflag [#allocation10], 1
    %1130 = vsyncpa %s1129, 1
    %1131 = vsyncpa [#allocation13], 1
    %s1132 = scalar_lea.sflag [#allocation13], 1
    %1133 = vsyncpa %s1132, 1
    %1134 = vsyncpa [#allocation16], 1
    %1135 = vsyncpa [#allocation5], 1
    %s1136 = scalar_lea.sflag [#allocation5], 1
    %1137 = vsyncpa %s1136, 1

</llo_original>
